<compile_context>
chip_gen: v6e
topology: v6e:2x2x1
jax: 0.10.0
libtpu: 0.0.40
codegen_flags: <defaults>
</compile_context>

<pallas_src>
import functools

import jax
import jax.numpy as jnp
from jax.experimental import pallas as pl
from jax.experimental.pallas import tpu as pltpu


def _round_up(x, m):
    return ((x + m - 1) // m) * m


def _working_set_bytes(tm, tk, tn, c_bytes, o_bytes):
    """Approximate VMEM working set for one grid step (with double buffers)."""
    return (2 * tm * tk * c_bytes      # x tiles (double-buffered)
            + 2 * tk * tn * c_bytes    # weight tiles (double-buffered)
            + 2 * 8 * tn * 4           # bias tiles (sublane-padded, f32)
            + 2 * tm * tn * o_bytes    # output tiles (double-buffered)
            + tm * tn * 4)             # f32 accumulator scratch


def _fused_linear_kernel(x_ref, w_ref, b_ref, o_ref, acc_ref):
    # x_ref: (TM, TK)  w_ref: (TK, TN)  b_ref: (1, TN) f32
    # o_ref: (TM, TN)  acc_ref: (TM, TN) f32 scratch
    k = pl.program_id(2)

    @pl.when(k == 0)
    def _init():
        acc_ref[...] = jnp.zeros_like(acc_ref)

    acc_ref[...] += jnp.dot(x_ref[...], w_ref[...],
                            preferred_element_type=jnp.float32)

    @pl.when(k == pl.num_programs(2) - 1)
    def _finalize():
        o_ref[...] = (acc_ref[...] + b_ref[...]).astype(o_ref.dtype)


@functools.partial(
    jax.jit,
    static_argnames=("tile_m", "tile_n", "tile_k", "splits",
                     "compute_dtype", "out_dtype"))
def _multihead_forward(x, w_fused, b_fused, *, tile_m, tile_n, tile_k,
                       splits, compute_dtype, out_dtype):
    """Fused forward: one pallas_call, then static per-head slicing."""
    B, F = x.shape
    F_pad, O_pad = w_fused.shape

    xc = x.astype(compute_dtype)
    if F_pad != F:                      # K padding (zeros contribute nothing)
        xc = jnp.pad(xc, ((0, 0), (0, F_pad - F)))
    m_pad = _round_up(B, tile_m)
    if m_pad != B:                      # batch padding to the M tile
        xc = jnp.pad(xc, ((0, m_pad - B), (0, 0)))

    grid = (m_pad // tile_m, O_pad // tile_n, F_pad // tile_k)

    c_bytes = jnp.dtype(compute_dtype).itemsize
    o_bytes = jnp.dtype(out_dtype).itemsize
    working = _working_set_bytes(tile_m, tile_k, tile_n, c_bytes, o_bytes)
    # Explicit scoped-VMEM budget; capped well below v7x's 64 MiB physical.
    vmem_limit = int(min(48 * 1024 * 1024,
                         max(32 * 1024 * 1024, 2 * working)))

    cost = pl.CostEstimate(
        flops=2 * m_pad * O_pad * F_pad,
        transcendentals=0,
        bytes_accessed=(m_pad * F_pad * c_bytes      # x
                        + F_pad * O_pad * c_bytes    # weights
                        + O_pad * 4                  # bias
                        + m_pad * O_pad * o_bytes))  # output

    # TODO(synk): for very large weight slabs with huge batches, reorder the
    # grid weight-stationary (N/K outer, M inner) so each weight tile is
    # fetched from HBM once instead of once per M tile.
    y_pad = pl.pallas_call(
        _fused_linear_kernel,
        out_shape=jax.ShapeDtypeStruct((m_pad, O_pad), out_dtype),
        grid=grid,
        in_specs=[
            pl.BlockSpec((tile_m, tile_k), lambda i, j, k: (i, k)),  # x
            pl.BlockSpec((tile_k, tile_n), lambda i, j, k: (k, j)),  # weights
            pl.BlockSpec((1, tile_n), lambda i, j, k: (0, j)),       # bias
        ],
        out_specs=pl.BlockSpec((tile_m, tile_n), lambda i, j, k: (i, j)),
        scratch_shapes=[pltpu.VMEM((tile_m, tile_n), jnp.float32)],
        compiler_params=pltpu.CompilerParams(
            dimension_semantics=("parallel", "parallel", "arbitrary"),
            vmem_limit_bytes=vmem_limit),
        cost_estimate=cost,
    )(xc, w_fused, b_fused)

    y = y_pad[:B]  # drop batch padding (no-op if none)

    # Static per-head slices of the lane-padded fused output.
    outs = []
    off = 0
    for nc in splits:
        outs.append(y[:, off:off + nc])
        off += nc
    return tuple(outs)


class MultiHead:
    """JAX/Pallas port of the PyTorch MultiHead module.

    heads[i]: Linear(in_features -> num_classes[i]); __call__ returns a tuple
    of per-head outputs, each (batch, num_classes[i]).
    """

    def __init__(self, in_features, num_classes, key,
                 param_dtype=jnp.float32, compute_dtype=jnp.bfloat16):
        self.in_features = int(in_features)
        self.num_classes = tuple(int(n) for n in num_classes)
        self.param_dtype = param_dtype
        self.compute_dtype = compute_dtype
        self.out_dtype = param_dtype
        # TODO(synk): on v5e, emitting bf16 outputs (out_dtype=bf16) halves the
        # dominant store traffic if downstream tolerates it.

        # Per-head params kept PyTorch-style (O, F) for reference / export.
        self.params = []
        bound = 1.0 / (self.in_features ** 0.5)
        for i, nc in enumerate(self.num_classes):
            kw, kb = jax.random.split(jax.random.fold_in(key, i))
            w = jax.random.uniform(kw, (nc, self.in_features), param_dtype,
                                   -bound, bound)
            b = jax.random.uniform(kb, (nc,), param_dtype, -bound, bound)
            self.params.append((w, b))

        # --- Tile geometry for K (features) and N (fused output width) ------
        F = self.in_features
        if F <= 1024:
            self.tile_k = F                      # single K block (full dim)
            F_pad = F
        else:
            self.tile_k = 512                    # K-tiled reduction
            F_pad = _round_up(F, 512)

        O_total = sum(self.num_classes)
        if O_total <= 1024:
            O_pad = _round_up(max(O_total, 1), 128)   # lane-dense, single N blk
            self.tile_n = O_pad
        else:
            self.tile_n = 512                    # N-tiled (v7x: parallel axis)
            O_pad = _round_up(O_total, 512)

        self.f_pad = F_pad
        self.o_pad = O_pad

        # --- Fused, pre-transposed, padded, pre-cast parameters (built once) -
        w_cat = jnp.concatenate([jnp.transpose(w) for w, _ in self.params],
                                axis=1)                       # (F, O_total)
        b_cat = jnp.concatenate([b for _, b in self.params])  # (O_total,)
        w_fused = jnp.pad(w_cat, ((0, F_pad - F), (0, O_pad - O_total)))
        self.w_fused = w_fused.astype(compute_dtype)          # bf16 by default
        self.b_fused = jnp.pad(b_cat, (0, O_pad - O_total)
                               ).astype(jnp.float32).reshape(1, O_pad)

    def __len__(self):
        return len(self.params)

    def _pick_tile_m(self, B):
        c_bytes = jnp.dtype(self.compute_dtype).itemsize
        o_bytes = jnp.dtype(self.out_dtype).itemsize
        sub = 16 if c_bytes < 4 else 8           # packed-sublane rounding
        if B >= 512:
            cands = (512, 256, 128)
        elif B >= 256:
            cands = (256, 128)
        elif B >= 128:
            cands = (128,)
        else:
            cands = (_round_up(max(B, 1), sub),)
        budget = 24 * 1024 * 1024                # working-set budget (all gens)
        tile_m = cands[-1]
        for tm in cands:
            if _working_set_bytes(tm, self.tile_k, self.tile_n,
                                  c_bytes, o_bytes) <= budget:
                tile_m = tm
                break
        return tile_m

    def __call__(self, x):
        B = x.shape[0]
        tile_m = self._pick_tile_m(B)
        return _multihead_forward(
            x, self.w_fused, self.b_fused,
            tile_m=tile_m, tile_n=self.tile_n, tile_k=self.tile_k,
            splits=self.num_classes,
            compute_dtype=self.compute_dtype, out_dtype=self.out_dtype)


if __name__ == "__main__":
    key = jax.random.PRNGKey(0)
    k_x, k_p = jax.random.split(key)

    batch = 8
    in_features = 32
    num_classes = (16, 24, 8)

    x = jax.random.normal(k_x, (batch, in_features), dtype=jnp.float32)

    ok = True

    # 1) f32 compute path: exact-ish check against full-precision reference.
    model_f32 = MultiHead(in_features, num_classes, key=k_p,
                          compute_dtype=jnp.float32)
    outs = jax.block_until_ready(model_f32(x))
    ok &= len(outs) == len(num_classes) and len(model_f32) == len(num_classes)
    for (w, b), y, nc in zip(model_f32.params, outs, num_classes):
        y_ref = jnp.dot(x, w.T, precision=jax.lax.Precision.HIGHEST) + b
        ok &= y.shape == (batch, nc)
        ok &= bool(jnp.allclose(y, y_ref, atol=1e-4, rtol=1e-4))

    # 2) Default bf16 MXU path: looser tolerance vs the f32 reference.
    model_bf16 = MultiHead(in_features, num_classes, key=k_p)
    outs_bf = jax.block_until_ready(model_bf16(x))
    for (w, b), y, nc in zip(model_bf16.params, outs_bf, num_classes):
        y_ref = jnp.dot(x, w.T, precision=jax.lax.Precision.HIGHEST) + b
        ok &= y.shape == (batch, nc)
        ok &= bool(jnp.allclose(y, y_ref, atol=3e-2, rtol=3e-2))

    # 3) Larger batch to exercise M tiling + batch padding.
    x_big = jax.random.normal(k_x, (300, in_features), dtype=jnp.float32)
    outs_big = jax.block_until_ready(model_f32(x_big))
    for (w, b), y, nc in zip(model_f32.params, outs_big, num_classes):
        y_ref = jnp.dot(x_big, w.T, precision=jax.lax.Precision.HIGHEST) + b
        ok &= y.shape == (300, nc)
        ok &= bool(jnp.allclose(y, y_ref, atol=1e-4, rtol=1e-4))

    print("KERNEL_OK" if ok else "KERNEL_MISMATCH")
</pallas_src>

<mosaic_0001>
module attributes {stable_mosaic.version = 11 : i64} {
  func.func @_fused_linear_kernel(%arg0: i32, %arg1: i32, %arg2: i32, %arg3: memref<8x32xf32, #tpu.memory_space<vmem>>, %arg4: memref<32x128xf32, #tpu.memory_space<vmem>>, %arg5: memref<1x128xf32, #tpu.memory_space<vmem>>, %arg6: memref<8x128xf32, #tpu.memory_space<vmem>>, %arg7: memref<8x128xf32, #tpu.memory_space<vmem>>) attributes {dimension_semantics = [#tpu.dimension_semantics<parallel>, #tpu.dimension_semantics<parallel>, #tpu.dimension_semantics<arbitrary>], iteration_bounds = array<i64: 1, 1, 1>, scalar_prefetch = 0 : i64, scratch_operands = 1 : i64, tpu.core_type = #tpu.core_type<tc>, window_params = [{transform_indices = @transform_0, window_bounds = array<i64: 8, 32>}, {transform_indices = @transform_1, window_bounds = array<i64: 32, 128>}, {transform_indices = @transform_2, window_bounds = array<i64: 1, 128>}, {transform_indices = @transform_3, window_bounds = array<i64: 8, 128>}]} {
    %c0_i32 = arith.constant 0 : i32
    %0 = arith.cmpi eq, %arg2, %c0_i32 : i32
    %1 = arith.extui %0 : i1 to i32
    %c0_i32_0 = arith.constant 0 : i32
    %2 = arith.cmpi ne, %1, %c0_i32_0 : i32
    scf.if %2 {
      %cst_10 = arith.constant 0.000000e+00 : f32
      %12 = vector.broadcast %cst_10 : f32 to vector<8x128xf32>
      %c0_11 = arith.constant 0 : index
      %c0_12 = arith.constant 0 : index
      %13 = vector.load %arg7[%c0_11, %c0_12] : memref<8x128xf32, #tpu.memory_space<vmem>>, vector<8x128xf32>
      tpu.vector_store %arg7[%c0_11, %c0_12], %12 {strides = array<i32>} : memref<8x128xf32, #tpu.memory_space<vmem>>, vector<8x128xf32>,
    } else {
    }
    %c0 = arith.constant 0 : index
    %c0_1 = arith.constant 0 : index
    %3 = vector.load %arg7[%c0, %c0_1] : memref<8x128xf32, #tpu.memory_space<vmem>>, vector<8x128xf32>
    %c0_2 = arith.constant 0 : index
    %c0_3 = arith.constant 0 : index
    %4 = vector.load %arg3[%c0_2, %c0_3] : memref<8x32xf32, #tpu.memory_space<vmem>>, vector<8x32xf32>
    %c0_4 = arith.constant 0 : index
    %c0_5 = arith.constant 0 : index
    %5 = vector.load %arg4[%c0_4, %c0_5] : memref<32x128xf32, #tpu.memory_space<vmem>>, vector<32x128xf32>
    %cst = arith.constant dense<0.000000e+00> : vector<8x128xf32>
    %6 = tpu.matmul %4, %5, %cst {dimension_numbers = #tpu.dot_dimension_numbers<[1], [0], [0], [1], [0, 0, 1, 1], [], []>} : vector<8x32xf32>, vector<32x128xf32>, vector<8x128xf32> -> vector<8x128xf32>
    %7 = arith.addf %3, %6 : vector<8x128xf32>
    %c0_6 = arith.constant 0 : index
    %c0_7 = arith.constant 0 : index
    %8 = vector.load %arg7[%c0_6, %c0_7] : memref<8x128xf32, #tpu.memory_space<vmem>>, vector<8x128xf32>
    tpu.vector_store %arg7[%c0_6, %c0_7], %7 {strides = array<i32>} : memref<8x128xf32, #tpu.memory_space<vmem>>, vector<8x128xf32>,
    %c0_i32_8 = arith.constant 0 : i32
    %9 = arith.cmpi eq, %arg2, %c0_i32_8 : i32
    %10 = arith.extui %9 : i1 to i32
    %c0_i32_9 = arith.constant 0 : i32
    %11 = arith.cmpi ne, %10, %c0_i32_9 : i32
    scf.if %11 {
      %c0_10 = arith.constant 0 : index
      %c0_11 = arith.constant 0 : index
      %12 = vector.load %arg7[%c0_10, %c0_11] : memref<8x128xf32, #tpu.memory_space<vmem>>, vector<8x128xf32>
      %c0_12 = arith.constant 0 : index
      %c0_13 = arith.constant 0 : index
      %13 = vector.load %arg5[%c0_12, %c0_13] : memref<1x128xf32, #tpu.memory_space<vmem>>, vector<1x128xf32>
      %14 = vector.broadcast %13 : vector<1x128xf32> to vector<8x128xf32>
      %15 = arith.addf %12, %14 : vector<8x128xf32>
      %c0_14 = arith.constant 0 : index
      %c0_15 = arith.constant 0 : index
      %16 = vector.load %arg6[%c0_14, %c0_15] : memref<8x128xf32, #tpu.memory_space<vmem>>, vector<8x128xf32>
      tpu.vector_store %arg6[%c0_14, %c0_15], %15 {strides = array<i32>} : memref<8x128xf32, #tpu.memory_space<vmem>>, vector<8x128xf32>,
    } else {
    }
    return
  }
  func.func @transform_0(%arg0: i32, %arg1: i32, %arg2: i32) -> (i32, i32) {
    %c0_i32 = arith.constant 0 : i32
    return %arg0, %arg2 : i32, i32
  }
  func.func @transform_1(%arg0: i32, %arg1: i32, %arg2: i32) -> (i32, i32) {
    %c0_i32 = arith.constant 0 : i32
    return %arg2, %arg1 : i32, i32
  }
  func.func @transform_2(%arg0: i32, %arg1: i32, %arg2: i32) -> (i32, i32) {
    %c0_i32 = arith.constant 0 : i32
    %c0_i32_0 = arith.constant 0 : i32
    return %c0_i32, %arg1 : i32, i32
  }
  func.func @transform_3(%arg0: i32, %arg1: i32, %arg2: i32) -> (i32, i32) {
    %c0_i32 = arith.constant 0 : i32
    return %arg0, %arg1 : i32, i32
  }
}

</mosaic_0001>

<llo_original>
// kernel: _multihead_forward.1
$region0: #{_multihead_forward.1}
  #allocation0 [shape = 'u32[]', space=smem, size = 0x4, offset = 0x4, fixed_abs, tag = 'smem constant byte address 0x4 - core index']
  #allocation1 [shape = 'u32[144,128]{1,0:T(1,128)}', space=vmem, size = 0x12000, scoped, tag = 'internal scratch']
  #allocation2 [shape = 'f32[8,128]{1,0:T(8,128)}', space=vmem, size = 0x1000, scoped, tag = 'scratch operand']
  %s0 = inlined_call_operand.hbm [shape: f32[8,32], index: 0, kind: input, shape index: {}]
  %s1 = inlined_call_operand.hbm [shape: f32[32,128], index: 1, kind: input, shape index: {}]
  %s2 = inlined_call_operand.vmem [shape: f32[1,128], index: 2, kind: input, shape index: {}]
  %s3 = inlined_call_operand.vmem [shape: f32[8,128], index: 3, kind: output, shape index: {}]
  %s4 = sld [smem:[#allocation0]]
  $region38: #{_multihead_forward.1} parent=0
    _
  %s6 = ssub.s32 1, %s4
  %s7 = scalar_select 0, %s6, %s4
  $region1: #{_multihead_forward.1} parent=0
    #allocation3 [shape = 'u8[4096]{0}', space=vmem, size = 0x1000, scoped, tag = 'input window, operand 0, single buffered']
    #allocation4 [shape = 's32[1]{0}', space=sflag, size = 0x4, scoped, tag = 'scoped memory for _multihead_forward.1']
    #allocation5 [shape = 'u8[16384]{0}', space=vmem, size = 0x4000, scoped, tag = 'input window, operand 1, single buffered']
    #allocation6 [shape = 's32[1]{0}', space=sflag, size = 0x4, scoped, tag = 'scoped memory for _multihead_forward.1']
    %8 = vsyncpa [#allocation4], 0
    %9 = vsyncpa [#allocation6], 0
    // Predicated region
    $region2: #{_multihead_forward.1} parent=1 // pred_check
      _
    $region3: #{_multihead_forward.1} parent=1 // pred_check_branch
      %11 = sbr.rel (0) target = $region5
    $region4: #{_multihead_forward.1} parent=1 // pred_region
      %s13 = ssub.s32 128, 128
      %14 = vsyncadd [#allocation4], %s13
      %s16 = sshll.u32 [#allocation3], 4
      %s17 = int_to_ptr.vmem [resolvable:$true] %s16
      %19 = dma.hbm_to_vmem [thread:$0]  %s0, 128, %s17, [#allocation4]
    $region5: #{_multihead_forward.1} parent=1 // pred_fallthru
      _
    // Predicated region
    $region6: #{_multihead_forward.1} parent=1 // pred_check
      _
    $region7: #{_multihead_forward.1} parent=1 // pred_check_branch
      %21 = sbr.rel (0) target = $region9
    $region8: #{_multihead_forward.1} parent=1 // pred_region
      %s23 = ssub.s32 512, 512
      %24 = vsyncadd [#allocation6], %s23
      %s25 = sshll.u32 [#allocation5], 4
      %s26 = int_to_ptr.vmem [resolvable:$true] %s25
      %31 = dma.hbm_to_vmem [thread:$0]  %s1, 512, %s26, [#allocation6], 128, 128, 8
    $region9: #{_multihead_forward.1} parent=1 // pred_fallthru
      _
    // Predicated region
    $region10: #{_multihead_forward.1} parent=1 // pred_check
      _
    $region11: #{_multihead_forward.1} parent=1 // pred_check_branch
      %33 = sbr.rel (0) target = $region13
    $region12: #{_multihead_forward.1} parent=1 // pred_region
      _
    $region13: #{_multihead_forward.1} parent=1 // pred_fallthru
      _
    // Predicated region
    $region14: #{_multihead_forward.1} parent=1 // pred_check
      _
    $region15: #{_multihead_forward.1} parent=1 // pred_check_branch
      %35 = sbr.rel (0) target = $region17
    $region16: #{_multihead_forward.1} parent=1 // pred_region
      %36 = dma.done [#allocation4], 128
    $region17: #{_multihead_forward.1} parent=1 // pred_fallthru
      _
    // Predicated region
    $region18: #{_multihead_forward.1} parent=1 // pred_check
      _
    $region19: #{_multihead_forward.1} parent=1 // pred_check_branch
      %38 = sbr.rel (0) target = $region21
    $region20: #{_multihead_forward.1} parent=1 // pred_region
      %39 = dma.done [#allocation6], 512
    $region21: #{_multihead_forward.1} parent=1 // pred_fallthru
      _
    %p40 = scmp.eq.s32.totalorder 0, 0
    // Predicated region
    $region22: #{_multihead_forward.1} parent=1 // pred_check
      %p41 = pneg %p40
    $region23: #{_multihead_forward.1} parent=1 // pred_check_branch
      %43 = sbr.rel (%p41) target = $region25
    $region24: #{_multihead_forward.1} parent=1 // pred_region
      %44 = vst [vmem:[#allocation2] sm:$0xff] 0.0
    $region25: #{_multihead_forward.1} parent=1 // pred_fallthru
      _
    %v45 = vld [vmem:[#allocation2] sm:$0xff]
    %v46 = vld [vmem:[#allocation3] sm:$0xff]
    %v47 = vld [vmem:[#allocation5] sm:$0xff]
    %v48 = vld [vmem:[#allocation5 + $0x8] sm:$0xff]
    %v49 = vld [vmem:[#allocation5 + $0x10] sm:$0xff]
    %v50 = vld [vmem:[#allocation5 + $0x18] sm:$0xff]
    %vm51 = vcmask 261120
    %v53 = vsel %vm51, %v46, 0
    %55 = vmatprep.subr.mxu0 0.0
    %56 = vmatpush1.msra.mxu0 0.0
    %57 = vmatprep.subr.mxu0 0.0
    %58 = vmatpush1.msra.mxu0 0.0
    %59 = vmatprep.subr.mxu0 0.0
    %60 = vmatpush1.msra.mxu0 0.0
    %61 = vmatprep.subr.mxu0 0.0
    %62 = vmatpush1.msra.mxu0 0.0
    %63 = vmatprep.subr.mxu0 0.0
    %64 = vmatpush1.msra.mxu0 0.0
    %65 = vmatprep.subr.mxu0 0.0
    %66 = vmatpush1.msra.mxu0 0.0
    %67 = vmatprep.subr.mxu0 0.0
    %68 = vmatpush1.msra.mxu0 0.0
    %69 = vmatprep.subr.mxu0 0.0
    %70 = vmatpush1.msra.mxu0 0.0
    %71 = vmatprep.subr.mxu0 0.0
    %72 = vmatpush1.msra.mxu0 0.0
    %73 = vmatprep.subr.mxu0 0.0
    %74 = vmatpush1.msra.mxu0 0.0
    %75 = vmatprep.subr.mxu0 0.0
    %76 = vmatpush1.msra.mxu0 0.0
    %77 = vmatprep.subr.mxu0 0.0
    %78 = vmatpush1.msra.mxu0 0.0
    %79 = vmatprep.subr.mxu0 0.0
    %80 = vmatpush1.msra.mxu0 %v50
    %81 = vmatprep.subr.mxu0 0.0
    %82 = vmatpush1.msra.mxu0 %v49
    %83 = vmatprep.subr.mxu0 0.0
    %84 = vmatpush1.msra.mxu0 %v48
    %85 = vmatprep.subr.mxu0 0.0
    %86 = vmatpush1.msra.mxu0 %v47
    %87 = vmatprep.subr.mxu0 0.0
    %88 = vmatpush2.msra.mxu0 0.0
    %89 = vmatprep.subr.mxu0 0.0
    %90 = vmatpush2.msra.mxu0 0.0
    %91 = vmatprep.subr.mxu0 0.0
    %92 = vmatpush2.msra.mxu0 0.0
    %93 = vmatprep.subr.mxu0 0.0
    %94 = vmatpush2.msra.mxu0 0.0
    %95 = vmatprep.subr.mxu0 0.0
    %96 = vmatpush2.msra.mxu0 0.0
    %97 = vmatprep.subr.mxu0 0.0
    %98 = vmatpush2.msra.mxu0 0.0
    %99 = vmatprep.subr.mxu0 0.0
    %100 = vmatpush2.msra.mxu0 0.0
    %101 = vmatprep.subr.mxu0 0.0
    %102 = vmatpush2.msra.mxu0 0.0
    %103 = vmatprep.subr.mxu0 0.0
    %104 = vmatpush2.msra.mxu0 0.0
    %105 = vmatprep.subr.mxu0 0.0
    %106 = vmatpush2.msra.mxu0 0.0
    %107 = vmatprep.subr.mxu0 0.0
    %108 = vmatpush2.msra.mxu0 0.0
    %109 = vmatprep.subr.mxu0 0.0
    %110 = vmatpush2.msra.mxu0 0.0
    %111 = vmatprep.subr.mxu0 0.0
    %112 = vmatpush2.msra.mxu0 0.0
    %113 = vmatprep.subr.mxu0 0.0
    %114 = vmatpush2.msra.mxu0 0.0
    %115 = vmatprep.subr.mxu0 0.0
    %116 = vmatpush2.msra.mxu0 0.0
    %117 = vmatprep.subr.mxu0 0.0
    %118 = vmatpush2.msra.mxu0 0.0
    %119 = vmatprep.mubr.f32.mxu0 0.0
    %120 = vmatmul.mubr.f32.gmra.mxu0 %v53
    %v121 = vpop.f32.mrf.mxu0
    %v122 = vadd.f32 0.0, %v121
    %v123 = vpop.f32.mrf.mxu0
    %124 = vdwg.mxu0
    %v125 = vadd.f32 %v45, %v122
    %126 = vst [vmem:[#allocation2] sm:$0xff] %v125
    // Predicated region
    $region26: #{_multihead_forward.1} parent=1 // pred_check
      %p127 = pneg %p40
    $region27: #{_multihead_forward.1} parent=1 // pred_check_branch
      %129 = sbr.rel (%p127) target = $region29
    $region28: #{_multihead_forward.1} parent=1 // pred_region
      %v130 = vld [vmem:[#allocation2] sm:$0xff]
      %v131 = vld [vmem:[%s2] sm:$0x1]
      %v133 = vlaneseq
      %v134 = vshrl.u32 %v133, 7
      %v135 = vsub.s32 0, %v134
      %v136 = vrot.slane %v131, %v135
      %v138 = vadd.f32 %v130, %v136
      %139 = vst [vmem:[%s3] sm:$0xff] %v138
    $region29: #{_multihead_forward.1} parent=1 // pred_fallthru
      _
    // Predicated region
    $region30: #{_multihead_forward.1} parent=1 // pred_check
      _
    $region31: #{_multihead_forward.1} parent=1 // pred_check_branch
      %141 = sbr.rel (0) target = $region33
    $region32: #{_multihead_forward.1} parent=1 // pred_region
      _
    $region33: #{_multihead_forward.1} parent=1 // pred_fallthru
      _
    // Predicated region
    $region34: #{_multihead_forward.1} parent=1 // pred_check
      _
    $region35: #{_multihead_forward.1} parent=1 // pred_check_branch
      %143 = sbr.rel (0) target = $region37
    $region36: #{_multihead_forward.1} parent=1 // pred_region
      _
    $region37: #{_multihead_forward.1} parent=1 // pred_fallthru
      _
    %144 = vsyncpa [#allocation4], 1
    %145 = vsyncpa [#allocation6], 1

</llo_original>
